<compile_context>
chip_gen: v7x
topology: tpu7x:2x2x1
jax: 0.10.0
libtpu: 0.0.40
codegen_flags: <defaults>
</compile_context>

<pallas_src>
import functools
import math

import jax
import jax.numpy as jnp
from jax.experimental import pallas as pl
from jax.experimental.pallas import tpu as pltpu


_COMPILER_PARAMS_1D = pltpu.CompilerParams(
    dimension_semantics=("parallel",),
    vmem_limit_bytes=32 * 1024 * 1024,  # explicit scoped-VMEM budget (safe on v5e/v6e/v7x)
)


# ----------------------------- Linear: y = x @ W + b -----------------------------

def linear_kernel(x_ref, w_ref, b_ref, o_ref):
    # x_ref: (TM, d_in); w_ref: (d_in, d_out); b_ref: (1, d_out); o_ref: (TM, d_out)
    y = jnp.dot(x_ref[...], w_ref[...], preferred_element_type=jnp.float32)
    o_ref[...] = (y + b_ref[...]).astype(o_ref.dtype)


def _pick_tile_m(M):
    # Largest MXU-friendly row tile that still yields >=2 grid steps (feeds both
    # TensorCores on v7x); fall back to the largest divisor / the whole extent.
    for t in (512, 256, 128, 64, 32, 16, 8):
        if M % t == 0 and M // t >= 2:
            return t
    for t in (512, 256, 128, 64, 32, 16, 8):
        if M % t == 0:
            return t
    return M


def linear(x2, w, b, *, tile_m=None, compute_dtype=None):
    """x2: (M, d_in); w: (d_in, d_out); b: (d_out,). Returns (M, d_out) float32.

    compute_dtype=jnp.bfloat16 casts the matmul operands (halves weight DMA and
    uses the bf16 MXU path on v6e/v7x); accumulation stays float32.
    """
    M, d_in = x2.shape
    d_out = w.shape[1]
    if tile_m is None:
        tile_m = _pick_tile_m(M)
    assert M % tile_m == 0

    if compute_dtype is not None:
        x2 = x2.astype(compute_dtype)
        w = w.astype(compute_dtype)
    b2 = b.reshape(1, d_out).astype(jnp.float32)

    return pl.pallas_call(
        linear_kernel,
        out_shape=jax.ShapeDtypeStruct((M, d_out), jnp.float32),
        grid_spec=pltpu.PrefetchScalarGridSpec(
            num_scalar_prefetch=0,
            grid=(M // tile_m,),
            in_specs=[
                pl.BlockSpec((tile_m, d_in), lambda i: (i, 0)),
                pl.BlockSpec((d_in, d_out), lambda i: (0, 0)),  # grid-invariant weight
                pl.BlockSpec((1, d_out), lambda i: (0, 0)),
            ],
            out_specs=pl.BlockSpec((tile_m, d_out), lambda i: (i, 0)),
        ),
        compiler_params=_COMPILER_PARAMS_1D,
    )(x2, w, b2)


# --------------------- Scaled dot-product attention (per B*H) ---------------------

def attention_kernel(q_ref, k_ref, v_ref, o_ref, aw_ref, *, scale):
    # q_ref: (1, Sq, d_k); k_ref/v_ref: (1, Sk, d_k); o_ref: (1, Sq, d_k); aw_ref: (1, Sq, Sk)
    q = q_ref[0]
    k = k_ref[0]
    v = v_ref[0]
    s = jnp.dot(q, k.T, preferred_element_type=jnp.float32) * scale
    m = jnp.max(s, axis=-1, keepdims=True)
    p = jnp.exp(s - m)
    w = p / jnp.sum(p, axis=-1, keepdims=True)
    # dropout(attn_weights): identity in eval mode.
    o = jnp.dot(w.astype(v.dtype), v, preferred_element_type=jnp.float32)
    o_ref[0] = o.astype(o_ref.dtype)
    aw_ref[0] = w.astype(aw_ref.dtype)


def attention_kernel_masked(mask_ref, q_ref, k_ref, v_ref, o_ref, aw_ref, *, scale):
    q = q_ref[0]
    k = k_ref[0]
    v = v_ref[0]
    s = jnp.dot(q, k.T, preferred_element_type=jnp.float32) * scale
    s = jnp.where(mask_ref[0] == 0, jnp.float32(-1e9), s)
    m = jnp.max(s, axis=-1, keepdims=True)
    p = jnp.exp(s - m)
    w = p / jnp.sum(p, axis=-1, keepdims=True)
    # dropout(attn_weights): identity in eval mode.
    o = jnp.dot(w.astype(v.dtype), v, preferred_element_type=jnp.float32)
    o_ref[0] = o.astype(o_ref.dtype)
    aw_ref[0] = w.astype(aw_ref.dtype)


def scaled_dot_product_attention(q, k, v, mask=None):
    """q: (B, H, Sq, d_k); k, v: (B, H, Sk, d_k).
    Returns (out (B,H,Sq,d_k) f32, attn_weights (B,H,Sq,Sk) f32)."""
    B, H, Sq, d_k = q.shape
    Sk = k.shape[2]
    BH = B * H
    scale = 1.0 / math.sqrt(d_k)

    q3 = q.reshape(BH, Sq, d_k).astype(jnp.float32)
    k3 = k.reshape(BH, Sk, d_k).astype(jnp.float32)
    v3 = v.reshape(BH, Sk, d_k).astype(jnp.float32)

    q_spec = pl.BlockSpec((1, Sq, d_k), lambda i: (i, 0, 0))
    kv_spec = pl.BlockSpec((1, Sk, d_k), lambda i: (i, 0, 0))
    out_specs = [
        pl.BlockSpec((1, Sq, d_k), lambda i: (i, 0, 0)),
        pl.BlockSpec((1, Sq, Sk), lambda i: (i, 0, 0)),
    ]
    out_shape = (
        jax.ShapeDtypeStruct((BH, Sq, d_k), jnp.float32),
        jax.ShapeDtypeStruct((BH, Sq, Sk), jnp.float32),
    )

    if mask is None:
        o3, w3 = pl.pallas_call(
            functools.partial(attention_kernel, scale=scale),
            out_shape=out_shape,
            grid_spec=pltpu.PrefetchScalarGridSpec(
                num_scalar_prefetch=0,
                grid=(BH,),
                in_specs=[q_spec, kv_spec, kv_spec],
                out_specs=out_specs,
            ),
            compiler_params=_COMPILER_PARAMS_1D,
        )(q3, k3, v3)
    else:
        mask3 = (
            jnp.broadcast_to(mask, (B, H, Sq, Sk))
            .astype(jnp.float32)
            .reshape(BH, Sq, Sk)
        )
        o3, w3 = pl.pallas_call(
            functools.partial(attention_kernel_masked, scale=scale),
            out_shape=out_shape,
            grid_spec=pltpu.PrefetchScalarGridSpec(
                num_scalar_prefetch=0,
                grid=(BH,),
                in_specs=[pl.BlockSpec((1, Sq, Sk), lambda i: (i, 0, 0)),
                          q_spec, kv_spec, kv_spec],
                out_specs=out_specs,
            ),
            compiler_params=_COMPILER_PARAMS_1D,
        )(mask3, q3, k3, v3)

    return o3.reshape(B, H, Sq, d_k), w3.reshape(B, H, Sq, Sk)


# -------------------------------- Full MHA forward --------------------------------

def multi_head_attention(query, key, value, params, *, num_heads, mask=None,
                         compute_dtype=None):
    """query: (B, Sq, d_model); key/value: (B, Sk, d_model).
    params = (wq, bq, wk, bk, wv, bv, wo, bo), weights stored (in, out).
    Returns (output (B, Sq, d_model), attn_weights (B, H, Sq, Sk))."""
    wq, bq, wk, bk, wv, bv, wo, bo = params
    B, Sq, d_model = query.shape
    Sk = key.shape[1]
    assert d_model % num_heads == 0
    d_k = d_model // num_heads

    if (query is key) and (key is value):
        # Self-attention: fused QKV projection (one lane-dense (M, 3*d_model) matmul).
        w_qkv = jnp.concatenate([wq, wk, wv], axis=1)   # (d_model, 3*d_model)
        b_qkv = jnp.concatenate([bq, bk, bv], axis=0)   # (3*d_model,)
        qkv = linear(query.reshape(B * Sq, d_model), w_qkv, b_qkv,
                     compute_dtype=compute_dtype)
        q2, k2, v2 = jnp.split(qkv, 3, axis=1)
    else:
        q2 = linear(query.reshape(B * Sq, d_model), wq, bq, compute_dtype=compute_dtype)
        k2 = linear(key.reshape(B * Sk, d_model), wk, bk, compute_dtype=compute_dtype)
        v2 = linear(value.reshape(B * Sk, d_model), wv, bv, compute_dtype=compute_dtype)

    # split_heads: (B, S, d_model) -> (B, H, S, d_k)
    q4 = q2.reshape(B, Sq, num_heads, d_k).transpose(0, 2, 1, 3)
    k4 = k2.reshape(B, Sk, num_heads, d_k).transpose(0, 2, 1, 3)
    v4 = v2.reshape(B, Sk, num_heads, d_k).transpose(0, 2, 1, 3)

    attn_out, attn_weights = scaled_dot_product_attention(q4, k4, v4, mask=mask)

    # combine_heads: (B, H, Sq, d_k) -> (B*Sq, d_model), then W_o projection.
    combined = attn_out.transpose(0, 2, 1, 3).reshape(B * Sq, d_model)
    out = linear(combined, wo, bo, compute_dtype=compute_dtype).reshape(B, Sq, d_model)
    return out, attn_weights


# ----------------------------------- Reference -----------------------------------

def reference_mha(query, key, value, params, *, num_heads, mask=None):
    wq, bq, wk, bk, wv, bv, wo, bo = params
    B, Sq, d_model = query.shape
    Sk = key.shape[1]
    d_k = d_model // num_heads
    q = (query @ wq + bq).reshape(B, Sq, num_heads, d_k).transpose(0, 2, 1, 3)
    k = (key @ wk + bk).reshape(B, Sk, num_heads, d_k).transpose(0, 2, 1, 3)
    v = (value @ wv + bv).reshape(B, Sk, num_heads, d_k).transpose(0, 2, 1, 3)
    s = jnp.einsum("bhqd,bhkd->bhqk", q, k) / math.sqrt(d_k)
    if mask is not None:
        s = jnp.where(jnp.broadcast_to(mask, s.shape) == 0, -1e9, s)
    w = jax.nn.softmax(s, axis=-1)
    o = jnp.einsum("bhqk,bhkd->bhqd", w, v)
    o = o.transpose(0, 2, 1, 3).reshape(B, Sq, d_model)
    return o @ wo + bo, w


if __name__ == "__main__":
    batch_size = 4
    seq_len = 8
    d_model = 128
    num_heads = 8

    key = jax.random.PRNGKey(0)
    kx, k1, k2, k3, k4, k5, k6, k7, k8 = jax.random.split(key, 9)

    x = jax.random.normal(kx, (batch_size, seq_len, d_model), dtype=jnp.float32)
    scale = 1.0 / d_model ** 0.5
    wq = jax.random.normal(k1, (d_model, d_model), dtype=jnp.float32) * scale
    bq = jax.random.normal(k2, (d_model,), dtype=jnp.float32) * 0.01
    wk = jax.random.normal(k3, (d_model, d_model), dtype=jnp.float32) * scale
    bk = jax.random.normal(k4, (d_model,), dtype=jnp.float32) * 0.01
    wv = jax.random.normal(k5, (d_model, d_model), dtype=jnp.float32) * scale
    bv = jax.random.normal(k6, (d_model,), dtype=jnp.float32) * 0.01
    wo = jax.random.normal(k7, (d_model, d_model), dtype=jnp.float32) * scale
    bo = jax.random.normal(k8, (d_model,), dtype=jnp.float32) * 0.01
    params = (wq, bq, wk, bk, wv, bv, wo, bo)

    # 1) Self-attention, no mask (f32 compute).
    out, attn_w = multi_head_attention(x, x, x, params, num_heads=num_heads)
    out = jax.block_until_ready(out)
    ref_out, ref_w = reference_mha(x, x, x, params, num_heads=num_heads)
    assert out.shape == (batch_size, seq_len, d_model)
    assert attn_w.shape == (batch_size, num_heads, seq_len, seq_len)
    assert jnp.allclose(out, ref_out, atol=1e-3, rtol=1e-3), "output mismatch (no mask)"
    assert jnp.allclose(attn_w, ref_w, atol=1e-3, rtol=1e-3), "weights mismatch (no mask)"

    # 2) Self-attention with a causal mask (exercises masked_fill path).
    causal = jnp.tril(jnp.ones((seq_len, seq_len), dtype=jnp.int32))
    out_m, attn_w_m = multi_head_attention(x, x, x, params, num_heads=num_heads,
                                           mask=causal)
    out_m = jax.block_until_ready(out_m)
    ref_out_m, ref_w_m = reference_mha(x, x, x, params, num_heads=num_heads, mask=causal)
    assert jnp.allclose(out_m, ref_out_m, atol=1e-3, rtol=1e-3), "output mismatch (mask)"
    assert jnp.allclose(attn_w_m, ref_w_m, atol=1e-3, rtol=1e-3), "weights mismatch (mask)"

    # 3) bf16 matmul operands for the projections (v6e/v7x fast path), f32 accumulation.
    out_bf, _ = multi_head_attention(x, x, x, params, num_heads=num_heads,
                                     compute_dtype=jnp.bfloat16)
    out_bf = jax.block_until_ready(out_bf)
    assert jnp.allclose(out_bf, ref_out, atol=1e-1, rtol=1e-1), "output mismatch (bf16)"

    print("KERNEL_OK")
</pallas_src>

<mosaic_0001>
module attributes {stable_mosaic.version = 11 : i64} {
  func.func @linear_kernel(%arg0: i32, %arg1: memref<16x128xf32, #tpu.memory_space<vmem>>, %arg2: memref<128x384xf32, #tpu.memory_space<vmem>>, %arg3: memref<1x384xf32, #tpu.memory_space<vmem>>, %arg4: memref<16x384xf32, #tpu.memory_space<vmem>>) attributes {dimension_semantics = [#tpu.dimension_semantics<parallel>], iteration_bounds = array<i64: 2>, scalar_prefetch = 0 : i64, scratch_operands = 0 : i64, tpu.core_type = #tpu.core_type<tc>, window_params = [{transform_indices = @transform_0, window_bounds = array<i64: 16, 128>}, {pipeline_mode = #tpu.pipeline_mode<synchronous>, transform_indices = @transform_1, window_bounds = array<i64: 128, 384>}, {pipeline_mode = #tpu.pipeline_mode<synchronous>, transform_indices = @transform_2, window_bounds = array<i64: 1, 384>}, {transform_indices = @transform_3, window_bounds = array<i64: 16, 384>}]} {
    %c0 = arith.constant 0 : index
    %c0_0 = arith.constant 0 : index
    %0 = vector.load %arg1[%c0, %c0_0] : memref<16x128xf32, #tpu.memory_space<vmem>>, vector<16x128xf32>
    %c0_1 = arith.constant 0 : index
    %c0_2 = arith.constant 0 : index
    %1 = vector.load %arg2[%c0_1, %c0_2] : memref<128x384xf32, #tpu.memory_space<vmem>>, vector<128x384xf32>
    %cst = arith.constant dense<0.000000e+00> : vector<16x384xf32>
    %2 = tpu.matmul %0, %1, %cst {dimension_numbers = #tpu.dot_dimension_numbers<[1], [0], [0], [1], [0, 0, 1, 1], [], []>} : vector<16x128xf32>, vector<128x384xf32>, vector<16x384xf32> -> vector<16x384xf32>
    %c0_3 = arith.constant 0 : index
    %c0_4 = arith.constant 0 : index
    %3 = vector.load %arg3[%c0_3, %c0_4] : memref<1x384xf32, #tpu.memory_space<vmem>>, vector<1x384xf32>
    %4 = vector.broadcast %3 : vector<1x384xf32> to vector<16x384xf32>
    %5 = arith.addf %2, %4 : vector<16x384xf32>
    %c0_5 = arith.constant 0 : index
    %c0_6 = arith.constant 0 : index
    %6 = vector.load %arg4[%c0_5, %c0_6] : memref<16x384xf32, #tpu.memory_space<vmem>>, vector<16x384xf32>
    tpu.vector_store %arg4[%c0_5, %c0_6], %5 {strides = array<i32>} : memref<16x384xf32, #tpu.memory_space<vmem>>, vector<16x384xf32>,
    return
  }
  func.func @transform_0(%arg0: i32) -> (i32, i32) {
    %c0_i32 = arith.constant 0 : i32
    %c0_i32_0 = arith.constant 0 : i32
    return %arg0, %c0_i32 : i32, i32
  }
  func.func @transform_1(%arg0: i32) -> (i32, i32) {
    %c0_i32 = arith.constant 0 : i32
    %c0_i32_0 = arith.constant 0 : i32
    %c0_i32_1 = arith.constant 0 : i32
    return %c0_i32, %c0_i32_0 : i32, i32
  }
  func.func @transform_2(%arg0: i32) -> (i32, i32) {
    %c0_i32 = arith.constant 0 : i32
    %c0_i32_0 = arith.constant 0 : i32
    %c0_i32_1 = arith.constant 0 : i32
    return %c0_i32, %c0_i32_0 : i32, i32
  }
  func.func @transform_3(%arg0: i32) -> (i32, i32) {
    %c0_i32 = arith.constant 0 : i32
    %c0_i32_0 = arith.constant 0 : i32
    return %arg0, %c0_i32 : i32, i32
  }
}

</mosaic_0001>

<llo_original>
// kernel: tpu_custom_call.1
$region0: #{tpu_custom_call.1}
  #allocation0 [shape = 'u32[]', space=smem, size = 0x4, offset = 0x4, fixed_abs, tag = 'smem constant byte address 0x4 - core index']
  #allocation1 [shape = 'u32[144,128]{1,0:T(1,128)}', space=vmem, size = 0x12000, scoped, tag = 'internal scratch']
  %s0 = inlined_call_operand.hbm [shape: f32[32,128], index: 0, kind: input, shape index: {}]
  %s1 = inlined_call_operand.hbm [shape: f32[128,384], index: 1, kind: input, shape index: {}]
  %s2 = inlined_call_operand.vmem [shape: f32[1,384], index: 2, kind: input, shape index: {}]
  %s3 = inlined_call_operand.hbm [shape: f32[32,384], index: 3, kind: output, shape index: {}]
  %s4 = sld [smem:[#allocation0]]
  $region53: #{tpu_custom_call.1} parent=0
    _
  %s6 = ssub.s32 1, %s4
  %s7 = scalar_select 0, %s6, %s4
  $region1: #{tpu_custom_call.1} parent=0
    #allocation2 [shape = 'u8[16384]{0}', space=vmem, size = 0x4000, scoped, tag = 'input window, operand 0']
    #allocation3 [shape = 's32[2]{0}', space=sflag, size = 0x8, scoped, tag = 'scoped memory for tpu_custom_call.1']
    #allocation4 [shape = 's32[2]{0}', space=sflag, size = 0x8, scoped, tag = 'scoped memory for tpu_custom_call.1']
    #allocation5 [shape = 'u8[196608]{0}', space=vmem, size = 0x30000, scoped, tag = 'input window, operand 1, single buffered']
    #allocation6 [shape = 's32[1]{0}', space=sflag, size = 0x4, scoped, tag = 'scoped memory for tpu_custom_call.1']
    #allocation7 [shape = 'u8[49152]{0}', space=vmem, size = 0xc000, scoped, tag = 'output window, operand 0']
    %8 = vsyncpa [#allocation3], 0
    %s9 = scalar_lea.sflag [#allocation3], 1
    %10 = vsyncpa %s9, 0
    %11 = vsyncpa [#allocation6], 0
    %12 = vsyncpa [#allocation4], 0
    %s13 = scalar_lea.sflag [#allocation4], 1
    %14 = vsyncpa %s13, 0
    loop: start=0, step=1, limit=4
    $region2: #{tpu_custom_call.1} parent=1 // loop_pre_header
      _
    $region3: #{tpu_custom_call.1} parent=1 // loop_header
      %s16 = sphi 0, %s20
      %p17 = scmp.ge.s32.totalorder %s16, 4
      %s26 = sphi 0, %s28
      %s29 = sphi 0, %s26
      %s30 = sphi 0, %s29
      %s46 = sphi 0, %s30
      %s50 = sphi 0, %s50
      %s52 = sphi 0, %s50
      %s53 = sphi 0, %s52
      %s67 = sphi 0, %s53
      %s71 = sphi 0, %s71
      %s73 = sphi 0, %s71
      %s74 = sphi 0, %s73
      %s88 = sphi 0, %s74
      %s94 = sphi 0, %s96
      %s97 = sphi 0, %s94
      %s98 = sphi 0, %s97
      %s114 = sphi 0, %s98
    $region4: #{tpu_custom_call.1} parent=1 // loop_header_branch
      %19 = sbr.rel (%p17) target = $region8
    $region5: #{tpu_custom_call.1} parent=1 // loop_body
      %s21 = ssub.s32 %s16, 1
      %s22 = ssub.s32 %s16, 2
      %s23 = sadd.s32 %s16, 1
      %s24 = ssub.s32 %s16, %s23
      %p25 = scmp.eq.s32.totalorder %s24, 0
      %s27 = sadd.s32 %s26, 1
      %s28 = scalar_select %p25, %s26, %s27
      %p31 = pneg %p25
      %p32 = scmp.eq.s32.totalorder %s16, 1
      %p33 = por %p31, %p32
      %p34 = scmp.ne.s32.totalorder %s26, %s29
      %p35 = scmp.eq.s32.totalorder %s16, 0
      %p36 = por %p34, %p35
      %p37 = scmp.ne.s32.totalorder %s26, %s29
      %p38 = scmp.eq.s32.totalorder %s21, 1
      %p39 = por %p37, %p38
      %p40 = scmp.ne.s32.totalorder %s29, %s30
      %p41 = scmp.eq.s32.totalorder %s21, 0
      %p42 = por %p40, %p41
      %p43 = scmp.ne.s32.totalorder %s29, %s30
      %p44 = scmp.eq.s32.totalorder %s22, 1
      %p45 = por %p43, %p44
      %p47 = scmp.ne.s32.totalorder %s30, %s46
      %p48 = scmp.eq.s32.totalorder %s22, 0
      %p49 = por %p47, %p48
      %s51 = sadd.s32 %s50, 1
      %p54 = scmp.eq.s32.totalorder %s16, 1
      %p55 = scmp.ne.s32.totalorder %s50, %s52
      %p56 = scmp.eq.s32.totalorder %s16, 0
      %p57 = por %p55, %p56
      %p58 = scmp.ne.s32.totalorder %s50, %s52
      %p59 = scmp.eq.s32.totalorder %s21, 1
      %p60 = por %p58, %p59
      %p61 = scmp.ne.s32.totalorder %s52, %s53
      %p62 = scmp.eq.s32.totalorder %s21, 0
      %p63 = por %p61, %p62
      %p64 = scmp.ne.s32.totalorder %s52, %s53
      %p65 = scmp.eq.s32.totalorder %s22, 1
      %p66 = por %p64, %p65
      %p68 = scmp.ne.s32.totalorder %s53, %s67
      %p69 = scmp.eq.s32.totalorder %s22, 0
      %p70 = por %p68, %p69
      %s72 = sadd.s32 %s71, 1
      %p75 = scmp.eq.s32.totalorder %s16, 1
      %p76 = scmp.ne.s32.totalorder %s71, %s73
      %p77 = scmp.eq.s32.totalorder %s16, 0
      %p78 = por %p76, %p77
      %p79 = scmp.ne.s32.totalorder %s71, %s73
      %p80 = scmp.eq.s32.totalorder %s21, 1
      %p81 = por %p79, %p80
      %p82 = scmp.ne.s32.totalorder %s73, %s74
      %p83 = scmp.eq.s32.totalorder %s21, 0
      %p84 = por %p82, %p83
      %p85 = scmp.ne.s32.totalorder %s73, %s74
      %p86 = scmp.eq.s32.totalorder %s22, 1
      %p87 = por %p85, %p86
      %p89 = scmp.ne.s32.totalorder %s74, %s88
      %p90 = scmp.eq.s32.totalorder %s22, 0
      %p91 = por %p89, %p90
      %s92 = ssub.s32 %s16, %s23
      %p93 = scmp.eq.s32.totalorder %s92, 0
      %s95 = sadd.s32 %s94, 1
      %s96 = scalar_select %p93, %s94, %s95
      %p99 = pneg %p93
      %p100 = scmp.eq.s32.totalorder %s16, 1
      %p101 = por %p99, %p100
      %p102 = scmp.ne.s32.totalorder %s94, %s97
      %p103 = scmp.eq.s32.totalorder %s16, 0
      %p104 = por %p102, %p103
      %p105 = scmp.ne.s32.totalorder %s94, %s97
      %p106 = scmp.eq.s32.totalorder %s21, 1
      %p107 = por %p105, %p106
      %p108 = scmp.ne.s32.totalorder %s97, %s98
      %p109 = scmp.eq.s32.totalorder %s21, 0
      %p110 = por %p108, %p109
      %p111 = scmp.ne.s32.totalorder %s97, %s98
      %p112 = scmp.eq.s32.totalorder %s22, 1
      %p113 = por %p111, %p112
      %p115 = scmp.ne.s32.totalorder %s98, %s114
      %p116 = scmp.eq.s32.totalorder %s22, 0
      %p117 = por %p115, %p116
      %p118 = scmp.le.s32.totalorder 1, %s16
      %p119 = scmp.lt.s32.totalorder %s16, 3
      %p120 = pnand %p118, %p119
      %p121 = pneg %p120
      // Predicated region
      $region9: #{tpu_custom_call.1} parent=5 // pred_check
        _
      $region10: #{tpu_custom_call.1} parent=5 // pred_check_branch
        %123 = sbr.rel (%p120) target = $region12
      $region11: #{tpu_custom_call.1} parent=5 // pred_region
        %s124 = ssub.s32 %s16, 1
        // Predicated region
        $region13: #{tpu_custom_call.1} parent=11 // pred_check
          %p125 = pneg %p63
        $region14: #{tpu_custom_call.1} parent=11 // pred_check_branch
          %127 = sbr.rel (%p125) target = $region16
        $region15: #{tpu_custom_call.1} parent=11 // pred_region
          %s129 = ssub.s32 6144, 6144
          %130 = vsyncadd [#allocation6], %s129
          %s131 = sshll.u32 [#allocation5], 4
          %s132 = int_to_ptr.vmem [resolvable:$true] %s131
          %137 = dma.hbm_to_vmem [thread:$0]  %s1, 6144, %s132, [#allocation6], 384, 384, 24
        $region16: #{tpu_custom_call.1} parent=11 // pred_fallthru
          _
        // Predicated region
        $region17: #{tpu_custom_call.1} parent=11 // pred_check
          %p138 = pneg %p84
        $region18: #{tpu_custom_call.1} parent=11 // pred_check_branch
          %140 = sbr.rel (%p138) target = $region20
        $region19: #{tpu_custom_call.1} parent=11 // pred_region
          _
        $region20: #{tpu_custom_call.1} parent=11 // pred_fallthru
          _
      $region12: #{tpu_custom_call.1} parent=5 // pred_fallthru
        _
      %p141 = scmp.lt.s32.totalorder %s16, 2
      // Predicated region
      $region21: #{tpu_custom_call.1} parent=5 // pred_check
        %p142 = pneg %p141
      $region22: #{tpu_custom_call.1} parent=5 // pred_check_branch
        %144 = sbr.rel (%p142) target = $region24
      $region23: #{tpu_custom_call.1} parent=5 // pred_region
        // Predicated region
        $region25: #{tpu_custom_call.1} parent=23 // pred_check
          %p145 = pneg %p36
        $region26: #{tpu_custom_call.1} parent=23 // pred_check_branch
          %147 = sbr.rel (%p145) target = $region28
        $region27: #{tpu_custom_call.1} parent=23 // pred_region
          %s148 = sand.u32 %s26, 1
          %s149 = scalar_lea.sflag [#allocation3], %s148
          %s150 = sand.u32 %s26, 1
          %s151 = smul.addr %s150, 16
          %s152 = scalar_lea.vmem [#allocation2], %s151
          %s153 = smul.u32 2, %s16
          %s155 = ssub.s32 256, 256
          %156 = vsyncadd %s149, %s155
          %s157 = smul.addr %s153, 128
          %s158 = scalar_lea.hbm %s0, %s157
          %s159 = sshll.u32 %s152, 4
          %s160 = int_to_ptr.vmem [resolvable:$true] %s159
          %165 = dma.hbm_to_vmem [thread:$0]  %s158, 256, %s160, %s149, 128, 128, 8
        $region28: #{tpu_custom_call.1} parent=23 // pred_fallthru
          _
      $region24: #{tpu_custom_call.1} parent=5 // pred_fallthru
        _
      %p166 = scmp.le.s32.totalorder 1, %s16
      %p167 = scmp.lt.s32.totalorder %s16, 3
      %p168 = pnand %p166, %p167
      %p169 = pneg %p168
      // Predicated region
      $region29: #{tpu_custom_call.1} parent=5 // pred_check
        _
      $region30: #{tpu_custom_call.1} parent=5 // pred_check_branch
        %171 = sbr.rel (%p168) target = $region32
      $region31: #{tpu_custom_call.1} parent=5 // pred_region
        %s172 = ssub.s32 %s16, 1
        %s173 = sand.u32 %s29, 1
        %s174 = scalar_lea.sflag [#allocation3], %s173
        %s175 = sand.u32 %s29, 1
        %s176 = smul.addr %s175, 16
        %s177 = scalar_lea.vmem [#allocation2], %s176
        // Predicated region
        $region33: #{tpu_custom_call.1} parent=31 // pred_check
          %p178 = pneg %p42
        $region34: #{tpu_custom_call.1} parent=31 // pred_check_branch
          %180 = sbr.rel (%p178) target = $region36
        $region35: #{tpu_custom_call.1} parent=31 // pred_region
          %181 = dma.done %s174, 256
        $region36: #{tpu_custom_call.1} parent=31 // pred_fallthru
          _
        // Predicated region
        $region37: #{tpu_custom_call.1} parent=31 // pred_check
          %p182 = pneg %p63
        $region38: #{tpu_custom_call.1} parent=31 // pred_check_branch
          %184 = sbr.rel (%p182) target = $region40
        $region39: #{tpu_custom_call.1} parent=31 // pred_region
          %185 = dma.done [#allocation6], 6144
        $region40: #{tpu_custom_call.1} parent=31 // pred_fallthru
          _
        %s186 = sand.u32 %s29, 1
        %s187 = scalar_lea.sflag [#allocation3], %s186
        %s188 = sand.u32 %s29, 1
        %s189 = smul.addr %s188, 16
        %s190 = scalar_lea.vmem [#allocation2], %s189
        %p191 = pneg %p42
        %p192 = pneg %p39
        %p193 = pneg %p63
        %p194 = pneg %p60
        %p195 = pneg %p84
        %p196 = pneg %p81
        %p197 = pneg %p110
        %p198 = pneg %p107
        %s199 = sand.u32 %s97, 1
        %s200 = scalar_lea.sflag [#allocation4], %s199
        %s201 = sand.u32 %s97, 1
        %s202 = smul.addr %s201, 48
        %s203 = scalar_lea.vmem [#allocation7], %s202
        %s204 = smul.u32 2, %s21
        %s205 = smul.u32 2, %s21
        %v206 = vld [vmem:[%s177] sm:$0xff]
        %v207 = vld [vmem:[%s177 + $0x8] sm:$0xff]
        %v208 = vld [vmem:[#allocation5] sm:$0xff]
        %v209 = vld [vmem:[#allocation5 + $0x8] sm:$0xff]
        %v210 = vld [vmem:[#allocation5 + $0x10] sm:$0xff]
        %v211 = vld [vmem:[#allocation5 + $0x18] sm:$0xff]
        %v212 = vld [vmem:[#allocation5 + $0x20] sm:$0xff]
        %v213 = vld [vmem:[#allocation5 + $0x28] sm:$0xff]
        %v214 = vld [vmem:[#allocation5 + $0x30] sm:$0xff]
        %v215 = vld [vmem:[#allocation5 + $0x38] sm:$0xff]
        %v216 = vld [vmem:[#allocation5 + $0x40] sm:$0xff]
        %v217 = vld [vmem:[#allocation5 + $0x48] sm:$0xff]
        %v218 = vld [vmem:[#allocation5 + $0x50] sm:$0xff]
        %v219 = vld [vmem:[#allocation5 + $0x58] sm:$0xff]
        %v220 = vld [vmem:[#allocation5 + $0x60] sm:$0xff]
        %v221 = vld [vmem:[#allocation5 + $0x68] sm:$0xff]
        %v222 = vld [vmem:[#allocation5 + $0x70] sm:$0xff]
        %v223 = vld [vmem:[#allocation5 + $0x78] sm:$0xff]
        %v224 = vld [vmem:[#allocation5 + $0x80] sm:$0xff]
        %v225 = vld [vmem:[#allocation5 + $0x88] sm:$0xff]
        %v226 = vld [vmem:[#allocation5 + $0x90] sm:$0xff]
        %v227 = vld [vmem:[#allocation5 + $0x98] sm:$0xff]
        %v228 = vld [vmem:[#allocation5 + $0xa0] sm:$0xff]
        %v229 = vld [vmem:[#allocation5 + $0xa8] sm:$0xff]
        %v230 = vld [vmem:[#allocation5 + $0xb0] sm:$0xff]
        %v231 = vld [vmem:[#allocation5 + $0xb8] sm:$0xff]
        %v232 = vld [vmem:[#allocation5 + $0xc0] sm:$0xff]
        %v233 = vld [vmem:[#allocation5 + $0xc8] sm:$0xff]
        %v234 = vld [vmem:[#allocation5 + $0xd0] sm:$0xff]
        %v235 = vld [vmem:[#allocation5 + $0xd8] sm:$0xff]
        %v236 = vld [vmem:[#allocation5 + $0xe0] sm:$0xff]
        %v237 = vld [vmem:[#allocation5 + $0xe8] sm:$0xff]
        %v238 = vld [vmem:[#allocation5 + $0xf0] sm:$0xff]
        %v239 = vld [vmem:[#allocation5 + $0xf8] sm:$0xff]
        %v240 = vld [vmem:[#allocation5 + $0x100] sm:$0xff]
        %v241 = vld [vmem:[#allocation5 + $0x108] sm:$0xff]
        %v242 = vld [vmem:[#allocation5 + $0x110] sm:$0xff]
        %v243 = vld [vmem:[#allocation5 + $0x118] sm:$0xff]
        %v244 = vld [vmem:[#allocation5 + $0x120] sm:$0xff]
        %v245 = vld [vmem:[#allocation5 + $0x128] sm:$0xff]
        %v246 = vld [vmem:[#allocation5 + $0x130] sm:$0xff]
        %v247 = vld [vmem:[#allocation5 + $0x138] sm:$0xff]
        %v248 = vld [vmem:[#allocation5 + $0x140] sm:$0xff]
        %v249 = vld [vmem:[#allocation5 + $0x148] sm:$0xff]
        %v250 = vld [vmem:[#allocation5 + $0x150] sm:$0xff]
        %v251 = vld [vmem:[#allocation5 + $0x158] sm:$0xff]
        %v252 = vld [vmem:[#allocation5 + $0x160] sm:$0xff]
        %v253 = vld [vmem:[#allocation5 + $0x168] sm:$0xff]
        %v254 = vld [vmem:[#allocation5 + $0x170] sm:$0xff]
        %v255 = vld [vmem:[#allocation5 + $0x178] sm:$0xff]
        %v256 = vld [vmem:[%s2] sm:$0x7]
        %v258 = vlaneseq
        %v259 = vshrl.u32 %v258, 7
        %v260 = vsub.s32 0, %v259
        %v261 = vrot.slane %v256, %v260
        %v262 = vlaneseq
        %v263 = vshrl.u32 %v262, 7
        %v264 = vsub.s32 1, %v263
        %v265 = vrot.slane %v256, %v264
        %v266 = vlaneseq
        %v267 = vshrl.u32 %v266, 7
        %v268 = vsub.s32 2, %v267
        %v269 = vrot.slane %v256, %v268
        %273 = vmatprep.subr.mxu0 %v209
        %274 = vmatpush1.msra.mxu0 %v208
        %275 = vmatprep.subr.mxu0 %v212
        %276 = vmatpush1.msra.mxu0 %v211
        %277 = vmatprep.subr.mxu0 %v215
        %278 = vmatpush1.msra.mxu0 %v214
        %279 = vmatprep.subr.mxu0 %v218
        %280 = vmatpush1.msra.mxu0 %v217
        %281 = vmatprep.subr.mxu0 %v221
        %282 = vmatpush1.msra.mxu0 %v220
        %283 = vmatprep.subr.mxu0 %v224
        %284 = vmatpush1.msra.mxu0 %v223
        %285 = vmatprep.subr.mxu0 %v227
        %286 = vmatpush1.msra.mxu0 %v226
        %287 = vmatprep.subr.mxu0 %v230
        %288 = vmatpush1.msra.mxu0 %v229
        %289 = vmatprep.subr.mxu0 %v233
        %290 = vmatpush1.msra.mxu0 %v232
        %291 = vmatprep.subr.mxu0 %v236
        %292 = vmatpush1.msra.mxu0 %v235
        %293 = vmatprep.subr.mxu0 %v239
        %294 = vmatpush1.msra.mxu0 %v238
        %295 = vmatprep.subr.mxu0 %v242
        %296 = vmatpush1.msra.mxu0 %v241
        %297 = vmatprep.subr.mxu0 %v245
        %298 = vmatpush1.msra.mxu0 %v244
        %299 = vmatprep.subr.mxu0 %v248
        %300 = vmatpush1.msra.mxu0 %v247
        %301 = vmatprep.subr.mxu0 %v251
        %302 = vmatpush1.msra.mxu0 %v250
        %303 = vmatprep.subr.mxu0 %v254
        %304 = vmatpush1.msra.mxu0 %v253
        %305 = vmatprep.subr.mxu0 0.0
        %306 = vmatpush1.msra.mxu0 0.0
        %307 = vmatprep.subr.mxu0 0.0
        %308 = vmatpush1.msra.mxu0 0.0
        %309 = vmatprep.subr.mxu0 0.0
        %310 = vmatpush1.msra.mxu0 0.0
        %311 = vmatprep.subr.mxu0 0.0
        %312 = vmatpush1.msra.mxu0 0.0
        %313 = vmatprep.subr.mxu0 0.0
        %314 = vmatpush1.msra.mxu0 0.0
        %315 = vmatprep.subr.mxu0 0.0
        %316 = vmatpush1.msra.mxu0 0.0
        %317 = vmatprep.subr.mxu0 0.0
        %318 = vmatpush1.msra.mxu0 0.0
        %319 = vmatprep.subr.mxu0 0.0
        %320 = vmatpush1.msra.mxu0 0.0
        %321 = vmatprep.subr.mxu0 0.0
        %322 = vmatpush1.msra.mxu0 0.0
        %323 = vmatprep.subr.mxu0 0.0
        %324 = vmatpush1.msra.mxu0 0.0
        %325 = vmatprep.subr.mxu0 0.0
        %326 = vmatpush1.msra.mxu0 0.0
        %327 = vmatprep.subr.mxu0 0.0
        %328 = vmatpush1.msra.mxu0 0.0
        %329 = vmatprep.subr.mxu0 0.0
        %330 = vmatpush1.msra.mxu0 0.0
        %331 = vmatprep.subr.mxu0 0.0
        %332 = vmatpush1.msra.mxu0 0.0
        %333 = vmatprep.subr.mxu0 0.0
        %334 = vmatpush1.msra.mxu0 0.0
        %335 = vmatprep.subr.mxu0 0.0
        %336 = vmatpush1.msra.mxu0 0.0
        %337 = vmatprep.mubr.f32.mxu0 0.0
        %338 = vmatmul.mubr.f32.gmra.mrb[0].mxu0 %v206
        %v339 = vpop.f32.mrb[0].mxu0
        %v340 = vadd.f32 %v261, %v339
        %v341 = vpop.f32.mrb[0].mxu0
        %v342 = vadd.f32 %v265, %v341
        %343 = vmatprep.mubr.f32.mxu0 0.0
        %344 = vmatmul.mubr.f32.gmra.mrb[0].mxu0 %v207
        %v345 = vpop.f32.mrb[0].mxu0
        %v346 = vadd.f32 %v261, %v345
        %v347 = vpop.f32.mrb[0].mxu0
        %v348 = vadd.f32 %v265, %v347
        %349 = vdwg.mxu0
        %350 = vmatprep.subr.mxu0 0.0
        %351 = vmatpush1.msra.mxu0 %v210
        %352 = vmatprep.subr.mxu0 0.0
        %353 = vmatpush1.msra.mxu0 %v213
        %354 = vmatprep.subr.mxu0 0.0
        %355 = vmatpush1.msra.mxu0 %v216
        %356 = vmatprep.subr.mxu0 0.0
        %357 = vmatpush1.msra.mxu0 %v219
        %358 = vmatprep.subr.mxu0 0.0
        %359 = vmatpush1.msra.mxu0 %v222
        %360 = vmatprep.subr.mxu0 0.0
        %361 = vmatpush1.msra.mxu0 %v225
        %362 = vmatprep.subr.mxu0 0.0
        %363 = vmatpush1.msra.mxu0 %v228
        %364 = vmatprep.subr.mxu0 0.0
        %365 = vmatpush1.msra.mxu0 %v231
        %366 = vmatprep.subr.mxu0 0.0
        %367 = vmatpush1.msra.mxu0 %v234
        %368 = vmatprep.subr.mxu0 0.0
        %369 = vmatpush1.msra.mxu0 %v237
        %370 = vmatprep.subr.mxu0 0.0
        %371 = vmatpush1.msra.mxu0 %v240
        %372 = vmatprep.subr.mxu0 0.0
        %373 = vmatpush1.msra.mxu0 %v243
        %374 = vmatprep.subr.mxu0 0.0
        %375 = vmatpush1.msra.mxu0 %v246
        %376 = vmatprep.subr.mxu0 0.0
        %377 = vmatpush1.msra.mxu0 %v249
        %378 = vmatprep.subr.mxu0 0.0
        %379 = vmatpush1.msra.mxu0 %v252
        %380 = vmatprep.subr.mxu0 0.0
        %381 = vmatpush1.msra.mxu0 %v255
        %382 = vmatprep.subr.mxu0 0.0
        %383 = vmatpush1.msra.mxu0 0.0
        %384 = vmatprep.subr.mxu0 0.0
        %385 = vmatpush1.msra.mxu0 0.0
        %386 = vmatprep.subr.mxu0 0.0
        %387 = vmatpush1.msra.mxu0 0.0
        %388 = vmatprep.subr.mxu0 0.0
        %389 = vmatpush1.msra.mxu0 0.0
        %390 = vmatprep.subr.mxu0 0.0
        %391 = vmatpush1.msra.mxu0 0.0
        %392 = vmatprep.subr.mxu0 0.0
        %393 = vmatpush1.msra.mxu0 0.0
        %394 = vmatprep.subr.mxu0 0.0
        %395 = vmatpush1.msra.mxu0 0.0
        %396 = vmatprep.subr.mxu0 0.0
        %397 = vmatpush1.msra.mxu0 0.0
        %398 = vmatprep.subr.mxu0 0.0
        %399 = vmatpush1.msra.mxu0 0.0
        %400 = vmatprep.subr.mxu0 0.0
        %401 = vmatpush1.msra.mxu0 0.0
        %402 = vmatprep.subr.mxu0 0.0
        %403 = vmatpush1.msra.mxu0 0.0
        %404 = vmatprep.subr.mxu0 0.0
        %405 = vmatpush1.msra.mxu0 0.0
        %406 = vmatprep.subr.mxu0 0.0
        %407 = vmatpush1.msra.mxu0 0.0
        %408 = vmatprep.subr.mxu0 0.0
        %409 = vmatpush1.msra.mxu0 0.0
        %410 = vmatprep.subr.mxu0 0.0
        %411 = vmatpush1.msra.mxu0 0.0
        %412 = vmatprep.subr.mxu0 0.0
        %413 = vmatpush1.msra.mxu0 0.0
        %414 = vmatprep.mubr.f32.mxu0 0.0
        %415 = vmatmul.mubr.f32.gmra.mrb[0].mxu0 %v206
        %v416 = vpop.f32.mrb[0].mxu0
        %v417 = vadd.f32 %v269, %v416
        %v418 = vpop.f32.mrb[0].mxu0
        %419 = vmatprep.mubr.f32.mxu0 0.0
        %420 = vmatmul.mubr.f32.gmra.mrb[0].mxu0 %v207
        %v421 = vpop.f32.mrb[0].mxu0
        %v422 = vadd.f32 %v269, %v421
        %v423 = vpop.f32.mrb[0].mxu0
        %424 = vdwg.mxu0
        %425 = vst [vmem:[%s203] sm:$0xff] %v340
        %426 = vst [vmem:[%s203 + $0x8] sm:$0xff] %v342
        %427 = vst [vmem:[%s203 + $0x10] sm:$0xff] %v417
        %428 = vst [vmem:[%s203 + $0x18] sm:$0xff] %v346
        %429 = vst [vmem:[%s203 + $0x20] sm:$0xff] %v348
        %430 = vst [vmem:[%s203 + $0x28] sm:$0xff] %v422
        %s431 = sand.u32 %s97, 1
        %s432 = scalar_lea.sflag [#allocation4], %s431
        %s433 = sand.u32 %s97, 1
        %s434 = smul.addr %s433, 48
        %s435 = scalar_lea.vmem [#allocation7], %s434
        // Predicated region
        $region41: #{tpu_custom_call.1} parent=31 // pred_check
          %p436 = pneg %p107
        $region42: #{tpu_custom_call.1} parent=31 // pred_check_branch
          %438 = sbr.rel (%p436) target = $region44
        $region43: #{tpu_custom_call.1} parent=31 // pred_region
          %s439 = smul.u32 2, %s21
          %s441 = ssub.s32 768, 768
          %442 = vsyncadd %s432, %s441
          %s443 = smul.addr %s439, 3
          %s444 = smul.addr %s443, 128
          %s445 = scalar_lea.hbm %s3, %s444
          %s446 = sshll.u32 %s435, 4
          %s447 = int_to_ptr.vmem [resolvable:$true] %s446
          %452 = dma.vmem_to_hbm [thread:$0]  %s447, 768, %s445, %s432, 384, 384, 24
        $region44: #{tpu_custom_call.1} parent=31 // pred_fallthru
          _
      $region32: #{tpu_custom_call.1} parent=5 // pred_fallthru
        _
      %p453 = scmp.le.s32.totalorder 2, %s16
      // Predicated region
      $region45: #{tpu_custom_call.1} parent=5 // pred_check
        %p454 = pneg %p453
      $region46: #{tpu_custom_call.1} parent=5 // pred_check_branch
        %456 = sbr.rel (%p454) target = $region48
      $region47: #{tpu_custom_call.1} parent=5 // pred_region
        %s457 = ssub.s32 %s16, 2
        // Predicated region
        $region49: #{tpu_custom_call.1} parent=47 // pred_check
          %p458 = pneg %p113
        $region50: #{tpu_custom_call.1} parent=47 // pred_check_branch
          %460 = sbr.rel (%p458) target = $region52
        $region51: #{tpu_custom_call.1} parent=47 // pred_region
          %s461 = sand.u32 %s98, 1
          %s462 = scalar_lea.sflag [#allocation4], %s461
          %s463 = sand.u32 %s98, 1
          %s464 = smul.addr %s463, 48
          %s465 = scalar_lea.vmem [#allocation7], %s464
          %466 = dma.done %s462, 768
        $region52: #{tpu_custom_call.1} parent=47 // pred_fallthru
          _
      $region48: #{tpu_custom_call.1} parent=5 // pred_fallthru
        _
    $region6: #{tpu_custom_call.1} parent=1 // loop_footer
      %s20 = sadd.s32 1, %s16
    $region7: #{tpu_custom_call.1} parent=1 // loop_footer_branch
      %15 = sbr.rel target = $region3
    $region8: #{tpu_custom_call.1} parent=1 // loop_exit
      _
    %467 = vsyncpa [#allocation3], 1
    %s468 = scalar_lea.sflag [#allocation3], 1
    %469 = vsyncpa %s468, 1
    %470 = vsyncpa [#allocation6], 1
    %471 = vsyncpa [#allocation4], 1
    %s472 = scalar_lea.sflag [#allocation4], 1
    %473 = vsyncpa %s472, 1

</llo_original>
